<compile_context>
chip_gen: v5e
topology: v5e:2x2
jax: 0.10.0
libtpu: 0.0.40
codegen_flags: <defaults>
</compile_context>

<pallas_src>
import jax
import jax.numpy as jnp
from jax.experimental import pallas as pl
from jax.experimental.pallas import tpu as pltpu

_CH = 32  # inner-loop slab height (rows); matches int8 sublane tiling
_BYTES_PER_PIXEL = 4 * 4 + 2 * 4 + 1  # pred_c(f32 x4) + gt_field(f32 x2) + mask(int8)


def _tpu_vmem_capacity():
    """Physical VMEM per TensorCore, with a safe fallback."""
    try:
        info = pltpu.get_tpu_info()
        cap = int(getattr(info, "vmem_capacity_bytes", 0))
        if cap > 0:
            return cap
    except Exception:
        pass
    return 128 * 1024 * 1024


def _pick_tile_h(h, w, step_budget):
    """Largest 32-multiple H tile (<= H, rounded down) fitting the per-step budget."""
    if h < 32:
        return h
    per_row = w * _BYTES_PER_PIXEL
    max_rows = max(32, (step_budget // per_row) // 32 * 32)
    return min(max_rows, (h // 32) * 32)


def _make_kernel(th, w, h_total, nt, split_batch, needs_row_mask, ch):
    n_chunks = th // ch

    def accumulate(c0r, c0i, c2r, c2i, zr, zi, maskf, row0, a_acc, c0_acc, c2_acc):
        # z^2, z^4 (complex squares) and c2 * z^2 (complex multiply).
        z2r = zr * zr - zi * zi
        z2i = 2.0 * zr * zi
        z4r = z2r * z2r - z2i * z2i
        z4i = 2.0 * z2r * z2i
        pr = c2r * z2r - c2i * z2i
        pi = c2r * z2i + c2i * z2r
        # f(z) = z^4 + c2 * z^2 + c0 ; framefield_align_error = |f(z)|^2
        fr = z4r + pr + c0r
        fi = z4i + pi + c0i
        align = (fr * fr + fi * fi) * maskf
        c0t = jnp.abs(1.0 - (c0r * c0r + c0i * c0i))
        c2t = jnp.abs(1.0 - (c2r * c2r + c2i * c2i))

        if needs_row_mask:
            # Zero out rows that fall past H (padded last block holds garbage);
            # jnp.where also discards any NaN/Inf coming from that garbage.
            rows = jax.lax.broadcasted_iota(jnp.int32, align.shape, 0)
            valid = rows < (h_total - row0)
            align = jnp.where(valid, align, 0.0)
            c0t = jnp.where(valid, c0t, 0.0)
            c2t = jnp.where(valid, c2t, 0.0)

        a_acc[0] += align
        c0_acc[0] += c0t
        c2_acc[0] += c2t

    def kernel(pred_ref, z_ref, m_ref, a_acc, c0_acc, c2_acc):
        p = pl.program_id(0)
        n = pl.program_id(1)
        t = pl.program_id(2)

        # Each parallel slice (grid axis 0) owns its own accumulator block;
        # initialize it on that slice's first sequential step.
        @pl.when(jnp.logical_and(n == 0, t == 0))
        def _():
            a_acc[...] = jnp.zeros_like(a_acc)
            c0_acc[...] = jnp.zeros_like(c0_acc)
            c2_acc[...] = jnp.zeros_like(c2_acc)

        tile_row0 = (t if split_batch else p * nt + t) * th

        if n_chunks == 1:
            # Single slab per step: no dynamic slicing at all.
            accumulate(pred_ref[0, 0], pred_ref[0, 1], pred_ref[0, 2], pred_ref[0, 3],
                       z_ref[0, 0], z_ref[0, 1],
                       m_ref[0].astype(jnp.float32),
                       tile_row0, a_acc, c0_acc, c2_acc)
        else:
            @pl.loop(0, n_chunks)
            def _(i):
                r = pl.multiple_of(i * ch, ch)
                sl = pl.ds(r, ch)
                accumulate(pred_ref[0, 0, sl, :], pred_ref[0, 1, sl, :],
                           pred_ref[0, 2, sl, :], pred_ref[0, 3, sl, :],
                           z_ref[0, 0, sl, :], z_ref[0, 1, sl, :],
                           m_ref[0, sl, :].astype(jnp.float32),
                           tile_row0 + r, a_acc, c0_acc, c2_acc)

    return kernel


def crossfield_align_offnadir_loss(pred_c, gt_field, gt_masks, level_2_align=False,
                                   tile_h=None):
    """JAX/Pallas equivalent of CrossfieldAlignOffNadirLoss.forward."""
    assert gt_masks.shape[-1] >= 2, (
        'gt_polygons_image should have at least 2 channels for interior and edges')
    if level_2_align:
        # TODO(synk): framefield_align_error_2level has no reference implementation
        # available here; only the default (level_2_align=False) path is implemented.
        raise NotImplementedError("level_2_align=True is not implemented")

    n_img, c_pred, h, w = pred_c.shape
    assert c_pred == 4 and gt_field.shape == (n_img, 2, h, w)
    assert gt_masks.shape[:3] == (n_img, h, w)

    # Generation-aware VMEM budgeting (v5e/v6e: 128 MiB, v7x: 64 MiB per TC).
    cap = _tpu_vmem_capacity()
    pair_budget = min(44 << 20, int(0.40 * cap))      # double-buffered input pair
    step_budget = max(pair_budget // 2, 1 << 20)

    if tile_h is not None:
        th = int(tile_h)
        if h < 32:
            assert th == h, "for H < 32 the tile must cover the full height"
        else:
            assert th % 32 == 0 and 32 <= th <= h, "tile_h must be a multiple of 32, <= H"
    else:
        th = _pick_tile_h(h, w, step_budget)

    n_tiles = pl.cdiv(h, th)

    # Megacore split: prefer batch when even, else split the H-tile axis,
    # shrinking th (multiples of 32) if needed to get an even tile count.
    if n_img % 2 == 0:
        n_par, split_batch = 2, True
    else:
        if tile_h is None and n_tiles % 2 != 0 and th > 32:
            th_try = th
            while th_try > 32 and pl.cdiv(h, th_try) % 2 != 0:
                th_try -= 32
            if pl.cdiv(h, th_try) % 2 == 0:
                th = th_try
                n_tiles = pl.cdiv(h, th)
        if n_tiles % 2 == 0:
            n_par, split_batch = 2, False
        else:
            n_par, split_batch = 1, True

    nb = n_img // n_par if split_batch else n_img
    nt = n_tiles if split_batch else n_tiles // n_par

    ch = min(_CH, th)
    needs_row_mask = (h % th != 0)

    # Combined boolean mask, streamed as a single int8 (N,H,W) array (1 B/px).
    # TODO(synk): producing gt_masks as uint8 upstream (or fusing this into the
    # mask producer) would remove ~half of this op's extra HBM traffic.
    m0 = gt_masks[..., 0]
    m1 = gt_masks[..., 1]
    mask = jnp.logical_or(jnp.logical_or(m1 == 1, m1 == 2), m0 == 1).astype(jnp.int8)

    if split_batch:
        img_map = lambda p, n, t: (p * nb + n, 0, t, 0)
        msk_map = lambda p, n, t: (p * nb + n, t, 0)
    else:
        img_map = lambda p, n, t: (n, 0, p * nt + t, 0)
        msk_map = lambda p, n, t: (n, p * nt + t, 0)

    acc_shape = jax.ShapeDtypeStruct((n_par, ch, w), jnp.float32)
    acc_spec = pl.BlockSpec((1, ch, w), lambda p, n, t: (p, 0, 0))

    step_bytes = th * w * _BYTES_PER_PIXEL
    acc_bytes = 3 * 2 * ch * w * 4
    temp_bytes = 16 * ch * w * 4              # headroom for slab-sized temporaries
    vmem_limit = 2 * step_bytes + acc_bytes + temp_bytes + (4 << 20)
    vmem_limit = int(max(16 << 20, min(vmem_limit, int(0.85 * cap))))

    total_px = n_img * h * w
    cost = pl.CostEstimate(
        flops=30 * total_px,
        transcendentals=0,
        bytes_accessed=_BYTES_PER_PIXEL * total_px + 3 * n_par * ch * w * 4)

    align_acc, c0_acc, c2_acc = pl.pallas_call(
        _make_kernel(th, w, h, nt, split_batch, needs_row_mask, ch),
        out_shape=(acc_shape, acc_shape, acc_shape),
        grid_spec=pltpu.PrefetchScalarGridSpec(
            num_scalar_prefetch=0,
            grid=(n_par, nb, nt),
            in_specs=[
                pl.BlockSpec((1, 4, th, w), img_map),   # whole pred_c (no wrapper slicing)
                pl.BlockSpec((1, 2, th, w), img_map),   # gt_field
                pl.BlockSpec((1, th, w), msk_map),      # combined int8 mask (single DMA)
            ],
            out_specs=(acc_spec, acc_spec, acc_spec),
        ),
        compiler_params=pltpu.CompilerParams(
            dimension_semantics=("parallel", "arbitrary", "arbitrary"),
            vmem_limit_bytes=vmem_limit),
        cost_estimate=cost,
    )(pred_c, gt_field, mask)

    # All three torch.mean terms share the same N*H*W denominator; sum partials in f32.
    denom = jnp.float32(n_img * h * w)
    total = jnp.sum(align_acc) + jnp.sum(c0_acc) + jnp.sum(c2_acc)
    return total / denom


def _reference(pred_c, gt_field, gt_masks):
    """Pure-JAX reference mirroring the torch semantics."""
    c0 = pred_c[:, :2]
    c2 = pred_c[:, 2:]
    zr, zi = gt_field[:, 0], gt_field[:, 1]
    z2r, z2i = zr * zr - zi * zi, 2 * zr * zi
    z4r, z4i = z2r * z2r - z2i * z2i, 2 * z2r * z2i
    pr = c2[:, 0] * z2r - c2[:, 1] * z2i
    pi = c2[:, 0] * z2i + c2[:, 1] * z2r
    fr = z4r + pr + c0[:, 0]
    fi = z4i + pi + c0[:, 1]
    align = fr * fr + fi * fi
    mask = jnp.logical_or(
        jnp.logical_or(gt_masks[..., 1] == 1, gt_masks[..., 1] == 2),
        gt_masks[..., 0] == 1)
    avg_align = jnp.mean(align * mask)
    c0_abs = jnp.mean(jnp.abs(1 - jnp.sum(c0 ** 2, axis=1)))
    c2_abs = jnp.mean(jnp.abs(1 - jnp.sum(c2 ** 2, axis=1)))
    return avg_align + c0_abs + c2_abs


if __name__ == "__main__":
    root = jax.random.PRNGKey(0)

    def run_case(case_idx, n, h, w, tile_h=None):
        k1, k2, k3 = jax.random.split(jax.random.fold_in(root, case_idx), 3)
        pred_c = jax.random.normal(k1, (n, 4, h, w), dtype=jnp.float32)
        gt_field = jax.random.normal(k2, (n, 2, h, w), dtype=jnp.float32)
        gt_masks = jax.random.randint(k3, (n, h, w, 3), 0, 3, dtype=jnp.int32)
        loss = crossfield_align_offnadir_loss(pred_c, gt_field, gt_masks, tile_h=tile_h)
        loss = jax.block_until_ready(loss)
        ref = _reference(pred_c, gt_field, gt_masks)
        assert jnp.allclose(loss, ref, rtol=1e-4, atol=1e-4), (case_idx, float(loss), float(ref))

    run_case(0, 2, 16, 128)               # tiny H (< 32): full-height single-tile path
    run_case(1, 2, 64, 128, tile_h=32)    # exact H tiling, batch split across cores
    run_case(2, 3, 64, 128, tile_h=32)    # odd batch -> H-tile axis split across cores
    run_case(3, 3, 48, 128, tile_h=32)    # partial last tile -> row-validity masking
    run_case(4, 3, 96, 128)               # auto th shrink for even tile count + chunk loop
    run_case(5, 2, 128, 256)              # multi-chunk inner loop, no masking
    print("KERNEL_OK")
</pallas_src>

<mosaic_0001>
module attributes {stable_mosaic.version = 11 : i64} {
  func.func @kernel(%arg0: i32, %arg1: i32, %arg2: i32, %arg3: memref<1x4x16x128xf32, #tpu.memory_space<vmem>>, %arg4: memref<1x2x16x128xf32, #tpu.memory_space<vmem>>, %arg5: memref<1x16x128xi8, #tpu.memory_space<vmem>>, %arg6: memref<1x16x128xf32, #tpu.memory_space<vmem>>, %arg7: memref<1x16x128xf32, #tpu.memory_space<vmem>>, %arg8: memref<1x16x128xf32, #tpu.memory_space<vmem>>) attributes {dimension_semantics = [#tpu.dimension_semantics<parallel>, #tpu.dimension_semantics<arbitrary>, #tpu.dimension_semantics<arbitrary>], iteration_bounds = array<i64: 2, 1, 1>, scalar_prefetch = 0 : i64, scratch_operands = 0 : i64, tpu.core_type = #tpu.core_type<tc>, window_params = [{transform_indices = @transform_0, window_bounds = array<i64: 1, 4, 16, 128>}, {transform_indices = @transform_1, window_bounds = array<i64: 1, 2, 16, 128>}, {transform_indices = @transform_2, window_bounds = array<i64: 1, 16, 128>}, {transform_indices = @transform_3, window_bounds = array<i64: 1, 16, 128>}, {transform_indices = @transform_4, window_bounds = array<i64: 1, 16, 128>}, {transform_indices = @transform_5, window_bounds = array<i64: 1, 16, 128>}]} {
    %c0_i32 = arith.constant 0 : i32
    %0 = arith.cmpi eq, %arg1, %c0_i32 : i32
    %c0_i32_0 = arith.constant 0 : i32
    %1 = arith.cmpi eq, %arg2, %c0_i32_0 : i32
    %2 = arith.andi %0, %1 : i1
    %3 = arith.extui %2 : i1 to i32
    %c0_i32_1 = arith.constant 0 : i32
    %4 = arith.cmpi ne, %3, %c0_i32_1 : i32
    scf.if %4 {
      %cst_46 = arith.constant 0.000000e+00 : f32
      %76 = vector.broadcast %cst_46 : f32 to vector<1x16x128xf32>
      %c0_47 = arith.constant 0 : index
      %c0_48 = arith.constant 0 : index
      %c0_49 = arith.constant 0 : index
      %77 = vector.load %arg6[%c0_47, %c0_48, %c0_49] : memref<1x16x128xf32, #tpu.memory_space<vmem>>, vector<1x16x128xf32>
      tpu.vector_store %arg6[%c0_47, %c0_48, %c0_49], %76 {strides = array<i32>} : memref<1x16x128xf32, #tpu.memory_space<vmem>>, vector<1x16x128xf32>,
      %cst_50 = arith.constant 0.000000e+00 : f32
      %78 = vector.broadcast %cst_50 : f32 to vector<1x16x128xf32>
      %c0_51 = arith.constant 0 : index
      %c0_52 = arith.constant 0 : index
      %c0_53 = arith.constant 0 : index
      %79 = vector.load %arg7[%c0_51, %c0_52, %c0_53] : memref<1x16x128xf32, #tpu.memory_space<vmem>>, vector<1x16x128xf32>
      tpu.vector_store %arg7[%c0_51, %c0_52, %c0_53], %78 {strides = array<i32>} : memref<1x16x128xf32, #tpu.memory_space<vmem>>, vector<1x16x128xf32>,
      %cst_54 = arith.constant 0.000000e+00 : f32
      %80 = vector.broadcast %cst_54 : f32 to vector<1x16x128xf32>
      %c0_55 = arith.constant 0 : index
      %c0_56 = arith.constant 0 : index
      %c0_57 = arith.constant 0 : index
      %81 = vector.load %arg8[%c0_55, %c0_56, %c0_57] : memref<1x16x128xf32, #tpu.memory_space<vmem>>, vector<1x16x128xf32>
      tpu.vector_store %arg8[%c0_55, %c0_56, %c0_57], %80 {strides = array<i32>} : memref<1x16x128xf32, #tpu.memory_space<vmem>>, vector<1x16x128xf32>,
    } else {
    }
    %c0 = arith.constant 0 : index
    %c0_2 = arith.constant 0 : index
    %c0_3 = arith.constant 0 : index
    %c0_4 = arith.constant 0 : index
    %5 = vector.load %arg3[%c0, %c0_2, %c0_3, %c0_4] : memref<1x4x16x128xf32, #tpu.memory_space<vmem>>, vector<1x1x16x128xf32>
    %6 = vector.shape_cast %5 : vector<1x1x16x128xf32> to vector<16x128xf32>
    %c0_5 = arith.constant 0 : index
    %c1 = arith.constant 1 : index
    %c0_6 = arith.constant 0 : index
    %c0_7 = arith.constant 0 : index
    %7 = vector.load %arg3[%c0_5, %c1, %c0_6, %c0_7] : memref<1x4x16x128xf32, #tpu.memory_space<vmem>>, vector<1x1x16x128xf32>
    %8 = vector.shape_cast %7 : vector<1x1x16x128xf32> to vector<16x128xf32>
    %c0_8 = arith.constant 0 : index
    %c2 = arith.constant 2 : index
    %c0_9 = arith.constant 0 : index
    %c0_10 = arith.constant 0 : index
    %9 = vector.load %arg3[%c0_8, %c2, %c0_9, %c0_10] : memref<1x4x16x128xf32, #tpu.memory_space<vmem>>, vector<1x1x16x128xf32>
    %10 = vector.shape_cast %9 : vector<1x1x16x128xf32> to vector<16x128xf32>
    %c0_11 = arith.constant 0 : index
    %c3 = arith.constant 3 : index
    %c0_12 = arith.constant 0 : index
    %c0_13 = arith.constant 0 : index
    %11 = vector.load %arg3[%c0_11, %c3, %c0_12, %c0_13] : memref<1x4x16x128xf32, #tpu.memory_space<vmem>>, vector<1x1x16x128xf32>
    %12 = vector.shape_cast %11 : vector<1x1x16x128xf32> to vector<16x128xf32>
    %c0_14 = arith.constant 0 : index
    %c0_15 = arith.constant 0 : index
    %c0_16 = arith.constant 0 : index
    %c0_17 = arith.constant 0 : index
    %13 = vector.load %arg4[%c0_14, %c0_15, %c0_16, %c0_17] : memref<1x2x16x128xf32, #tpu.memory_space<vmem>>, vector<1x1x16x128xf32>
    %14 = vector.shape_cast %13 : vector<1x1x16x128xf32> to vector<16x128xf32>
    %c0_18 = arith.constant 0 : index
    %c1_19 = arith.constant 1 : index
    %c0_20 = arith.constant 0 : index
    %c0_21 = arith.constant 0 : index
    %15 = vector.load %arg4[%c0_18, %c1_19, %c0_20, %c0_21] : memref<1x2x16x128xf32, #tpu.memory_space<vmem>>, vector<1x1x16x128xf32>
    %16 = vector.shape_cast %15 : vector<1x1x16x128xf32> to vector<16x128xf32>
    %c0_22 = arith.constant 0 : index
    %c0_23 = arith.constant 0 : index
    %c0_24 = arith.constant 0 : index
    %17 = vector.load %arg5[%c0_22, %c0_23, %c0_24] : memref<1x16x128xi8, #tpu.memory_space<vmem>>, vector<1x16x128xi8>
    %18 = vector.shape_cast %17 : vector<1x16x128xi8> to vector<16x128xi8>
    %19 = arith.sitofp %18 : vector<16x128xi8> to vector<16x128xf32>
    %20 = arith.mulf %14, %14 : vector<16x128xf32>
    %21 = arith.mulf %16, %16 : vector<16x128xf32>
    %22 = arith.subf %20, %21 : vector<16x128xf32>
    %cst = arith.constant 2.000000e+00 : f32
    %23 = vector.broadcast %cst : f32 to vector<16x128xf32>
    %24 = arith.mulf %23, %14 : vector<16x128xf32>
    %25 = arith.mulf %24, %16 : vector<16x128xf32>
    %26 = arith.mulf %22, %22 : vector<16x128xf32>
    %27 = arith.mulf %25, %25 : vector<16x128xf32>
    %28 = arith.subf %26, %27 : vector<16x128xf32>
    %cst_25 = arith.constant 2.000000e+00 : f32
    %29 = vector.broadcast %cst_25 : f32 to vector<16x128xf32>
    %30 = arith.mulf %29, %22 : vector<16x128xf32>
    %31 = arith.mulf %30, %25 : vector<16x128xf32>
    %32 = arith.mulf %10, %22 : vector<16x128xf32>
    %33 = arith.mulf %12, %25 : vector<16x128xf32>
    %34 = arith.subf %32, %33 : vector<16x128xf32>
    %35 = arith.mulf %10, %25 : vector<16x128xf32>
    %36 = arith.mulf %12, %22 : vector<16x128xf32>
    %37 = arith.addf %35, %36 : vector<16x128xf32>
    %38 = arith.addf %28, %34 : vector<16x128xf32>
    %39 = arith.addf %38, %6 : vector<16x128xf32>
    %40 = arith.addf %31, %37 : vector<16x128xf32>
    %41 = arith.addf %40, %8 : vector<16x128xf32>
    %42 = arith.mulf %39, %39 : vector<16x128xf32>
    %43 = arith.mulf %41, %41 : vector<16x128xf32>
    %44 = arith.addf %42, %43 : vector<16x128xf32>
    %45 = arith.mulf %44, %19 : vector<16x128xf32>
    %46 = arith.mulf %6, %6 : vector<16x128xf32>
    %47 = arith.mulf %8, %8 : vector<16x128xf32>
    %48 = arith.addf %46, %47 : vector<16x128xf32>
    %cst_26 = arith.constant 1.000000e+00 : f32
    %49 = vector.broadcast %cst_26 : f32 to vector<16x128xf32>
    %50 = arith.subf %49, %48 : vector<16x128xf32>
    %51 = math.absf %50 : vector<16x128xf32>
    %52 = arith.mulf %10, %10 : vector<16x128xf32>
    %53 = arith.mulf %12, %12 : vector<16x128xf32>
    %54 = arith.addf %52, %53 : vector<16x128xf32>
    %cst_27 = arith.constant 1.000000e+00 : f32
    %55 = vector.broadcast %cst_27 : f32 to vector<16x128xf32>
    %56 = arith.subf %55, %54 : vector<16x128xf32>
    %57 = math.absf %56 : vector<16x128xf32>
    %c0_28 = arith.constant 0 : index
    %c0_29 = arith.constant 0 : index
    %c0_30 = arith.constant 0 : index
    %58 = vector.load %arg6[%c0_28, %c0_29, %c0_30] : memref<1x16x128xf32, #tpu.memory_space<vmem>>, vector<1x16x128xf32>
    %59 = vector.shape_cast %58 : vector<1x16x128xf32> to vector<16x128xf32>
    %60 = arith.addf %59, %45 : vector<16x128xf32>
    %c0_31 = arith.constant 0 : index
    %c0_32 = arith.constant 0 : index
    %c0_33 = arith.constant 0 : index
    %61 = vector.load %arg6[%c0_31, %c0_32, %c0_33] : memref<1x16x128xf32, #tpu.memory_space<vmem>>, vector<1x16x128xf32>
    %62 = vector.shape_cast %61 : vector<1x16x128xf32> to vector<16x128xf32>
    %63 = vector.shape_cast %60 : vector<16x128xf32> to vector<1x16x128xf32>
    tpu.vector_store %arg6[%c0_31, %c0_32, %c0_33], %63 {strides = array<i32>} : memref<1x16x128xf32, #tpu.memory_space<vmem>>, vector<1x16x128xf32>,
    %c0_34 = arith.constant 0 : index
    %c0_35 = arith.constant 0 : index
    %c0_36 = arith.constant 0 : index
    %64 = vector.load %arg7[%c0_34, %c0_35, %c0_36] : memref<1x16x128xf32, #tpu.memory_space<vmem>>, vector<1x16x128xf32>
    %65 = vector.shape_cast %64 : vector<1x16x128xf32> to vector<16x128xf32>
    %66 = arith.addf %65, %51 : vector<16x128xf32>
    %c0_37 = arith.constant 0 : index
    %c0_38 = arith.constant 0 : index
    %c0_39 = arith.constant 0 : index
    %67 = vector.load %arg7[%c0_37, %c0_38, %c0_39] : memref<1x16x128xf32, #tpu.memory_space<vmem>>, vector<1x16x128xf32>
    %68 = vector.shape_cast %67 : vector<1x16x128xf32> to vector<16x128xf32>
    %69 = vector.shape_cast %66 : vector<16x128xf32> to vector<1x16x128xf32>
    tpu.vector_store %arg7[%c0_37, %c0_38, %c0_39], %69 {strides = array<i32>} : memref<1x16x128xf32, #tpu.memory_space<vmem>>, vector<1x16x128xf32>,
    %c0_40 = arith.constant 0 : index
    %c0_41 = arith.constant 0 : index
    %c0_42 = arith.constant 0 : index
    %70 = vector.load %arg8[%c0_40, %c0_41, %c0_42] : memref<1x16x128xf32, #tpu.memory_space<vmem>>, vector<1x16x128xf32>
    %71 = vector.shape_cast %70 : vector<1x16x128xf32> to vector<16x128xf32>
    %72 = arith.addf %71, %57 : vector<16x128xf32>
    %c0_43 = arith.constant 0 : index
    %c0_44 = arith.constant 0 : index
    %c0_45 = arith.constant 0 : index
    %73 = vector.load %arg8[%c0_43, %c0_44, %c0_45] : memref<1x16x128xf32, #tpu.memory_space<vmem>>, vector<1x16x128xf32>
    %74 = vector.shape_cast %73 : vector<1x16x128xf32> to vector<16x128xf32>
    %75 = vector.shape_cast %72 : vector<16x128xf32> to vector<1x16x128xf32>
    tpu.vector_store %arg8[%c0_43, %c0_44, %c0_45], %75 {strides = array<i32>} : memref<1x16x128xf32, #tpu.memory_space<vmem>>, vector<1x16x128xf32>,
    return
  }
  func.func @transform_0(%arg0: i32, %arg1: i32, %arg2: i32) -> (i32, i32, i32, i32) {
    %c1_i32 = arith.constant 1 : i32
    %0 = arith.muli %arg0, %c1_i32 : i32
    %1 = arith.addi %0, %arg1 : i32
    %c0_i32 = arith.constant 0 : i32
    %c0_i32_0 = arith.constant 0 : i32
    %c0_i32_1 = arith.constant 0 : i32
    return %1, %c0_i32, %arg2, %c0_i32_0 : i32, i32, i32, i32
  }
  func.func @transform_1(%arg0: i32, %arg1: i32, %arg2: i32) -> (i32, i32, i32, i32) {
    %c1_i32 = arith.constant 1 : i32
    %0 = arith.muli %arg0, %c1_i32 : i32
    %1 = arith.addi %0, %arg1 : i32
    %c0_i32 = arith.constant 0 : i32
    %c0_i32_0 = arith.constant 0 : i32
    %c0_i32_1 = arith.constant 0 : i32
    return %1, %c0_i32, %arg2, %c0_i32_0 : i32, i32, i32, i32
  }
  func.func @transform_2(%arg0: i32, %arg1: i32, %arg2: i32) -> (i32, i32, i32) {
    %c1_i32 = arith.constant 1 : i32
    %0 = arith.muli %arg0, %c1_i32 : i32
    %1 = arith.addi %0, %arg1 : i32
    %c0_i32 = arith.constant 0 : i32
    %c0_i32_0 = arith.constant 0 : i32
    return %1, %arg2, %c0_i32 : i32, i32, i32
  }
  func.func @transform_3(%arg0: i32, %arg1: i32, %arg2: i32) -> (i32, i32, i32) {
    %c0_i32 = arith.constant 0 : i32
    %c0_i32_0 = arith.constant 0 : i32
    %c0_i32_1 = arith.constant 0 : i32
    return %arg0, %c0_i32, %c0_i32_0 : i32, i32, i32
  }
  func.func @transform_4(%arg0: i32, %arg1: i32, %arg2: i32) -> (i32, i32, i32) {
    %c0_i32 = arith.constant 0 : i32
    %c0_i32_0 = arith.constant 0 : i32
    %c0_i32_1 = arith.constant 0 : i32
    return %arg0, %c0_i32, %c0_i32_0 : i32, i32, i32
  }
  func.func @transform_5(%arg0: i32, %arg1: i32, %arg2: i32) -> (i32, i32, i32) {
    %c0_i32 = arith.constant 0 : i32
    %c0_i32_0 = arith.constant 0 : i32
    %c0_i32_1 = arith.constant 0 : i32
    return %arg0, %c0_i32, %c0_i32_0 : i32, i32, i32
  }
}

</mosaic_0001>

<llo_original>
// kernel: tpu_custom_call.1
$region0: #{tpu_custom_call.1}
  #allocation0 [shape = 'u32[]', space=smem, size = 0x4, offset = 0x4, fixed_abs, tag = 'smem constant byte address 0x4 - core index']
  #allocation1 [shape = 'u32[72,128]{1,0:T(1,128)}', space=vmem, size = 0x9000, scoped, tag = 'internal scratch']
  %s0 = inlined_call_operand.hbm [shape: f32[2,4,16,128], index: 0, kind: input, shape index: {}]
  %s1 = inlined_call_operand.hbm [shape: f32[2,2,16,128], index: 1, kind: input, shape index: {}]
  %s2 = inlined_call_operand.hbm [shape: s8[2,16,128], index: 2, kind: input, shape index: {}]
  %s3 = inlined_call_operand.hbm [shape: f32[2,16,128], index: 3, kind: output, shape index: {0}]
  %s4 = inlined_call_operand.hbm [shape: f32[2,16,128], index: 4, kind: output, shape index: {1}]
  %s5 = inlined_call_operand.hbm [shape: f32[2,16,128], index: 5, kind: output, shape index: {2}]
  %6 = xla_tuple %s3, %s4, %s5
  %s7 = sld [smem:[#allocation0]]
  $region77: #{tpu_custom_call.1} parent=0
    _
  %s9 = ssub.s32 1, %s7
  %s10 = scalar_select 0, %s9, %s7
  $region1: #{tpu_custom_call.1} parent=0
    #allocation2 [shape = 'u8[65536]{0}', space=vmem, size = 0x10000, scoped, tag = 'input window, operand 0']
    #allocation3 [shape = 's32[2]{0}', space=sflag, size = 0x8, scoped, tag = 'scoped memory for tpu_custom_call.1']
    #allocation4 [shape = 's32[2]{0}', space=sflag, size = 0x8, scoped, tag = 'scoped memory for tpu_custom_call.1']
    #allocation5 [shape = 'u8[32768]{0}', space=vmem, size = 0x8000, scoped, tag = 'input window, operand 1']
    #allocation6 [shape = 's32[2]{0}', space=sflag, size = 0x8, scoped, tag = 'scoped memory for tpu_custom_call.1']
    #allocation7 [shape = 'u8[4096]{0}', space=vmem, size = 0x1000, scoped, tag = 'input window, operand 2']
    #allocation8 [shape = 'u8[16384]{0}', space=vmem, size = 0x4000, scoped, tag = 'output window, operand 0']
    #allocation9 [shape = 'u8[16384]{0}', space=vmem, size = 0x4000, scoped, tag = 'output window, operand 1']
    #allocation10 [shape = 's32[2]{0}', space=sflag, size = 0x8, scoped, tag = 'scoped memory for tpu_custom_call.1']
    #allocation11 [shape = 'u8[16384]{0}', space=vmem, size = 0x4000, scoped, tag = 'output window, operand 2']
    %11 = vsyncpa [#allocation3], 0
    %s12 = scalar_lea.sflag [#allocation3], 1
    %13 = vsyncpa %s12, 0
    %14 = vsyncpa [#allocation6], 0
    %s15 = scalar_lea.sflag [#allocation6], 1
    %16 = vsyncpa %s15, 0
    %17 = vsyncpa [#allocation4], 0
    %s18 = scalar_lea.sflag [#allocation4], 1
    %19 = vsyncpa %s18, 0
    %20 = vsyncpa [#allocation10], 0
    %s21 = scalar_lea.sflag [#allocation10], 1
    %22 = vsyncpa %s21, 0
    loop: start=0, step=1, limit=4
    $region2: #{tpu_custom_call.1} parent=1 // loop_pre_header
      _
    $region3: #{tpu_custom_call.1} parent=1 // loop_header
      %s24 = sphi 0, %s28
      %p25 = scmp.ge.s32.totalorder %s24, 4
      %s31 = sphi 0, %s50
      %s32 = sphi 0, %s46
      %s33 = sphi 0, %s42
      %s34 = sphi 0, %s31
      %s35 = sphi 0, %s32
      %s36 = sphi 0, %s33
      %s37 = sphi 0, %s34
      %s38 = sphi 0, %s35
      %s39 = sphi 0, %s36
      %s57 = sphi 0, %s59
      %s60 = sphi 0, %s57
      %s61 = sphi 0, %s60
      %s77 = sphi 0, %s61
      %s87 = sphi 0, %s89
      %s90 = sphi 0, %s87
      %s91 = sphi 0, %s90
      %s107 = sphi 0, %s91
      %s117 = sphi 0, %s119
      %s120 = sphi 0, %s117
      %s121 = sphi 0, %s120
      %s137 = sphi 0, %s121
      %s143 = sphi 0, %s145
      %s146 = sphi 0, %s143
      %s147 = sphi 0, %s146
      %s163 = sphi 0, %s147
      %s169 = sphi 0, %s171
      %s172 = sphi 0, %s169
      %s173 = sphi 0, %s172
      %s189 = sphi 0, %s173
      %s195 = sphi 0, %s197
      %s198 = sphi 0, %s195
      %s199 = sphi 0, %s198
      %s215 = sphi 0, %s199
    $region4: #{tpu_custom_call.1} parent=1 // loop_header_branch
      %27 = sbr.rel (%p25) target = $region8
    $region5: #{tpu_custom_call.1} parent=1 // loop_body
      %s29 = ssub.s32 %s24, 1
      %s30 = ssub.s32 %s24, 2
      %s40 = sadd.s32 1, %s33
      %p41 = scmp.ge.s32.totalorder %s40, 1
      %s42 = scalar_select %p41, 0, %s40
      %s43 = sadd.s32 1, %s32
      %s44 = scalar_select %p41, %s43, %s32
      %p45 = scmp.ge.s32.totalorder %s44, 1
      %s46 = scalar_select %p45, 0, %s44
      %s47 = sadd.s32 1, %s31
      %s48 = scalar_select %p45, %s47, %s31
      %p49 = scmp.ge.s32.totalorder %s48, 2
      %s50 = scalar_select %p49, 0, %s48
      %s51 = sadd.s32 %s31, %s32
      %s52 = sadd.s32 %s50, %s46
      %s53 = ssub.s32 %s51, %s52
      %s54 = ssub.s32 %s33, %s42
      %s55 = sor.u32 %s53, %s54
      %p56 = scmp.eq.s32.totalorder %s55, 0
      %s58 = sadd.s32 %s57, 1
      %s59 = scalar_select %p56, %s57, %s58
      %p62 = pneg %p56
      %p63 = scmp.eq.s32.totalorder %s24, 1
      %p64 = por %p62, %p63
      %p65 = scmp.ne.s32.totalorder %s57, %s60
      %p66 = scmp.eq.s32.totalorder %s24, 0
      %p67 = por %p65, %p66
      %p68 = scmp.ne.s32.totalorder %s57, %s60
      %p69 = scmp.eq.s32.totalorder %s29, 1
      %p70 = por %p68, %p69
      %p71 = scmp.ne.s32.totalorder %s60, %s61
      %p72 = scmp.eq.s32.totalorder %s29, 0
      %p73 = por %p71, %p72
      %p74 = scmp.ne.s32.totalorder %s60, %s61
      %p75 = scmp.eq.s32.totalorder %s30, 1
      %p76 = por %p74, %p75
      %p78 = scmp.ne.s32.totalorder %s61, %s77
      %p79 = scmp.eq.s32.totalorder %s30, 0
      %p80 = por %p78, %p79
      %s81 = sadd.s32 %s31, %s32
      %s82 = sadd.s32 %s50, %s46
      %s83 = ssub.s32 %s81, %s82
      %s84 = ssub.s32 %s33, %s42
      %s85 = sor.u32 %s83, %s84
      %p86 = scmp.eq.s32.totalorder %s85, 0
      %s88 = sadd.s32 %s87, 1
      %s89 = scalar_select %p86, %s87, %s88
      %p92 = pneg %p86
      %p93 = scmp.eq.s32.totalorder %s24, 1
      %p94 = por %p92, %p93
      %p95 = scmp.ne.s32.totalorder %s87, %s90
      %p96 = scmp.eq.s32.totalorder %s24, 0
      %p97 = por %p95, %p96
      %p98 = scmp.ne.s32.totalorder %s87, %s90
      %p99 = scmp.eq.s32.totalorder %s29, 1
      %p100 = por %p98, %p99
      %p101 = scmp.ne.s32.totalorder %s90, %s91
      %p102 = scmp.eq.s32.totalorder %s29, 0
      %p103 = por %p101, %p102
      %p104 = scmp.ne.s32.totalorder %s90, %s91
      %p105 = scmp.eq.s32.totalorder %s30, 1
      %p106 = por %p104, %p105
      %p108 = scmp.ne.s32.totalorder %s91, %s107
      %p109 = scmp.eq.s32.totalorder %s30, 0
      %p110 = por %p108, %p109
      %s111 = sadd.s32 %s31, %s32
      %s112 = sadd.s32 %s50, %s46
      %s113 = ssub.s32 %s111, %s112
      %s114 = ssub.s32 %s33, %s42
      %s115 = sor.u32 %s113, %s114
      %p116 = scmp.eq.s32.totalorder %s115, 0
      %s118 = sadd.s32 %s117, 1
      %s119 = scalar_select %p116, %s117, %s118
      %p122 = pneg %p116
      %p123 = scmp.eq.s32.totalorder %s24, 1
      %p124 = por %p122, %p123
      %p125 = scmp.ne.s32.totalorder %s117, %s120
      %p126 = scmp.eq.s32.totalorder %s24, 0
      %p127 = por %p125, %p126
      %p128 = scmp.ne.s32.totalorder %s117, %s120
      %p129 = scmp.eq.s32.totalorder %s29, 1
      %p130 = por %p128, %p129
      %p131 = scmp.ne.s32.totalorder %s120, %s121
      %p132 = scmp.eq.s32.totalorder %s29, 0
      %p133 = por %p131, %p132
      %p134 = scmp.ne.s32.totalorder %s120, %s121
      %p135 = scmp.eq.s32.totalorder %s30, 1
      %p136 = por %p134, %p135
      %p138 = scmp.ne.s32.totalorder %s121, %s137
      %p139 = scmp.eq.s32.totalorder %s30, 0
      %p140 = por %p138, %p139
      %s141 = ssub.s32 %s31, %s50
      %p142 = scmp.eq.s32.totalorder %s141, 0
      %s144 = sadd.s32 %s143, 1
      %s145 = scalar_select %p142, %s143, %s144
      %p148 = pneg %p142
      %p149 = scmp.eq.s32.totalorder %s24, 1
      %p150 = por %p148, %p149
      %p151 = scmp.ne.s32.totalorder %s143, %s146
      %p152 = scmp.eq.s32.totalorder %s24, 0
      %p153 = por %p151, %p152
      %p154 = scmp.ne.s32.totalorder %s143, %s146
      %p155 = scmp.eq.s32.totalorder %s29, 1
      %p156 = por %p154, %p155
      %p157 = scmp.ne.s32.totalorder %s146, %s147
      %p158 = scmp.eq.s32.totalorder %s29, 0
      %p159 = por %p157, %p158
      %p160 = scmp.ne.s32.totalorder %s146, %s147
      %p161 = scmp.eq.s32.totalorder %s30, 1
      %p162 = por %p160, %p161
      %p164 = scmp.ne.s32.totalorder %s147, %s163
      %p165 = scmp.eq.s32.totalorder %s30, 0
      %p166 = por %p164, %p165
      %s167 = ssub.s32 %s31, %s50
      %p168 = scmp.eq.s32.totalorder %s167, 0
      %s170 = sadd.s32 %s169, 1
      %s171 = scalar_select %p168, %s169, %s170
      %p174 = pneg %p168
      %p175 = scmp.eq.s32.totalorder %s24, 1
      %p176 = por %p174, %p175
      %p177 = scmp.ne.s32.totalorder %s169, %s172
      %p178 = scmp.eq.s32.totalorder %s24, 0
      %p179 = por %p177, %p178
      %p180 = scmp.ne.s32.totalorder %s169, %s172
      %p181 = scmp.eq.s32.totalorder %s29, 1
      %p182 = por %p180, %p181
      %p183 = scmp.ne.s32.totalorder %s172, %s173
      %p184 = scmp.eq.s32.totalorder %s29, 0
      %p185 = por %p183, %p184
      %p186 = scmp.ne.s32.totalorder %s172, %s173
      %p187 = scmp.eq.s32.totalorder %s30, 1
      %p188 = por %p186, %p187
      %p190 = scmp.ne.s32.totalorder %s173, %s189
      %p191 = scmp.eq.s32.totalorder %s30, 0
      %p192 = por %p190, %p191
      %s193 = ssub.s32 %s31, %s50
      %p194 = scmp.eq.s32.totalorder %s193, 0
      %s196 = sadd.s32 %s195, 1
      %s197 = scalar_select %p194, %s195, %s196
      %p200 = pneg %p194
      %p201 = scmp.eq.s32.totalorder %s24, 1
      %p202 = por %p200, %p201
      %p203 = scmp.ne.s32.totalorder %s195, %s198
      %p204 = scmp.eq.s32.totalorder %s24, 0
      %p205 = por %p203, %p204
      %p206 = scmp.ne.s32.totalorder %s195, %s198
      %p207 = scmp.eq.s32.totalorder %s29, 1
      %p208 = por %p206, %p207
      %p209 = scmp.ne.s32.totalorder %s198, %s199
      %p210 = scmp.eq.s32.totalorder %s29, 0
      %p211 = por %p209, %p210
      %p212 = scmp.ne.s32.totalorder %s198, %s199
      %p213 = scmp.eq.s32.totalorder %s30, 1
      %p214 = por %p212, %p213
      %p216 = scmp.ne.s32.totalorder %s199, %s215
      %p217 = scmp.eq.s32.totalorder %s30, 0
      %p218 = por %p216, %p217
      %p219 = scmp.le.s32.totalorder 1, %s24
      %p220 = scmp.lt.s32.totalorder %s24, 3
      %p221 = pnand %p219, %p220
      %p222 = pneg %p221
      // Predicated region
      $region9: #{tpu_custom_call.1} parent=5 // pred_check
        _
      $region10: #{tpu_custom_call.1} parent=5 // pred_check_branch
        %224 = sbr.rel (%p221) target = $region12
      $region11: #{tpu_custom_call.1} parent=5 // pred_region
        %s225 = ssub.s32 %s24, 1
      $region12: #{tpu_custom_call.1} parent=5 // pred_fallthru
        _
      %p226 = scmp.lt.s32.totalorder %s24, 2
      // Predicated region
      $region13: #{tpu_custom_call.1} parent=5 // pred_check
        %p227 = pneg %p226
      $region14: #{tpu_custom_call.1} parent=5 // pred_check_branch
        %229 = sbr.rel (%p227) target = $region16
      $region15: #{tpu_custom_call.1} parent=5 // pred_region
        // Predicated region
        $region17: #{tpu_custom_call.1} parent=15 // pred_check
          %p230 = pneg %p67
        $region18: #{tpu_custom_call.1} parent=15 // pred_check_branch
          %232 = sbr.rel (%p230) target = $region20
        $region19: #{tpu_custom_call.1} parent=15 // pred_region
          %s233 = sand.u32 %s57, 1
          %s234 = scalar_lea.sflag [#allocation3], %s233
          %s235 = sand.u32 %s57, 1
          %s236 = smul.addr %s235, 64
          %s237 = scalar_lea.vmem [#allocation2], %s236
          %s238 = sadd.s32 %s31, %s32
          %s239 = smul.u32 2, %s33
          %241 = vsyncadd %s234, 0
          %s242 = smul.addr %s238, 8
          %s243 = sadd.s32 %s239, %s242
          %s244 = smul.addr %s243, 8
          %s245 = scalar_lea.hbm %s0, %s244
          %s246 = sshll.u32 %s245, 4
          %s247 = int_to_ptr.hbm [resolvable:$true] %s246
          %s248 = sshll.u32 %s237, 4
          %s249 = int_to_ptr.vmem [resolvable:$true] %s248
          %254 = dma.hbm_to_vmem [thread:$0]  %s247, 1024, %s249, %s234, 128, 128, 8
        $region20: #{tpu_custom_call.1} parent=15 // pred_fallthru
          _
        // Predicated region
        $region21: #{tpu_custom_call.1} parent=15 // pred_check
          %p255 = pneg %p97
        $region22: #{tpu_custom_call.1} parent=15 // pred_check_branch
          %257 = sbr.rel (%p255) target = $region24
        $region23: #{tpu_custom_call.1} parent=15 // pred_region
          %s258 = sand.u32 %s24, 1
          %s259 = scalar_lea.sflag [#allocation6], %s258
          %s260 = sand.u32 %s87, 1
          %s261 = smul.addr %s260, 32
          %s262 = scalar_lea.vmem [#allocation5], %s261
          %s263 = sadd.s32 %s31, %s32
          %s264 = smul.u32 2, %s33
          %266 = vsyncadd %s259, 0
          %s267 = smul.addr %s263, 4
          %s268 = sadd.s32 %s264, %s267
          %s269 = smul.addr %s268, 8
          %s270 = scalar_lea.hbm %s1, %s269
          %s271 = sshll.u32 %s270, 4
          %s272 = int_to_ptr.hbm [resolvable:$true] %s271
          %s273 = sshll.u32 %s262, 4
          %s274 = int_to_ptr.vmem [resolvable:$true] %s273
          %279 = dma.hbm_to_vmem [thread:$0]  %s272, 512, %s274, %s259, 128, 128, 8
        $region24: #{tpu_custom_call.1} parent=15 // pred_fallthru
          _
        // Predicated region
        $region25: #{tpu_custom_call.1} parent=15 // pred_check
          %p280 = pneg %p127
        $region26: #{tpu_custom_call.1} parent=15 // pred_check_branch
          %282 = sbr.rel (%p280) target = $region28
        $region27: #{tpu_custom_call.1} parent=15 // pred_region
          %s283 = sand.u32 %s24, 1
          %s284 = scalar_lea.sflag [#allocation6], %s283
          %s285 = sand.u32 %s117, 1
          %s286 = smul.addr %s285, 4
          %s287 = scalar_lea.vmem [#allocation7], %s286
          %s288 = sadd.s32 %s31, %s32
          %s289 = smul.u32 2, %s33
          %291 = vsyncadd %s284, 0
          %s292 = smul.addr %s288, 2
          %s293 = sadd.s32 %s289, %s292
          %s294 = smul.addr %s293, 2
          %s295 = scalar_lea.hbm %s2, %s294
          %s296 = sshll.u32 %s295, 4
          %s297 = int_to_ptr.hbm [resolvable:$true] %s296
          %s298 = sshll.u32 %s287, 4
          %s299 = int_to_ptr.vmem [resolvable:$true] %s298
          %304 = dma.hbm_to_vmem [thread:$0]  %s297, 64, %s299, %s284, 32, 32, 2
        $region28: #{tpu_custom_call.1} parent=15 // pred_fallthru
          _
      $region16: #{tpu_custom_call.1} parent=5 // pred_fallthru
        _
      %p305 = scmp.le.s32.totalorder 1, %s24
      %p306 = scmp.lt.s32.totalorder %s24, 3
      %p307 = pnand %p305, %p306
      %p308 = pneg %p307
      // Predicated region
      $region29: #{tpu_custom_call.1} parent=5 // pred_check
        _
      $region30: #{tpu_custom_call.1} parent=5 // pred_check_branch
        %310 = sbr.rel (%p307) target = $region32
      $region31: #{tpu_custom_call.1} parent=5 // pred_region
        %s311 = ssub.s32 %s24, 1
        %s312 = sand.u32 %s60, 1
        %s313 = scalar_lea.sflag [#allocation3], %s312
        %s314 = sand.u32 %s60, 1
        %s315 = smul.addr %s314, 64
        %s316 = scalar_lea.vmem [#allocation2], %s315
        // Predicated region
        $region33: #{tpu_custom_call.1} parent=31 // pred_check
          %p317 = pneg %p73
        $region34: #{tpu_custom_call.1} parent=31 // pred_check_branch
          %319 = sbr.rel (%p317) target = $region36
        $region35: #{tpu_custom_call.1} parent=31 // pred_region
          %321 = dma.done %s313, 1024
        $region36: #{tpu_custom_call.1} parent=31 // pred_fallthru
          _
        %s322 = sand.u32 %s29, 1
        %s323 = scalar_lea.sflag [#allocation6], %s322
        %s324 = sand.u32 %s90, 1
        %s325 = smul.addr %s324, 32
        %s326 = scalar_lea.vmem [#allocation5], %s325
        // Predicated region
        $region37: #{tpu_custom_call.1} parent=31 // pred_check
          %p327 = pneg %p103
        $region38: #{tpu_custom_call.1} parent=31 // pred_check_branch
          %329 = sbr.rel (%p327) target = $region40
        $region39: #{tpu_custom_call.1} parent=31 // pred_region
          %331 = dma.done %s323, 512
        $region40: #{tpu_custom_call.1} parent=31 // pred_fallthru
          _
        %s332 = sand.u32 %s29, 1
        %s333 = scalar_lea.sflag [#allocation6], %s332
        %s334 = sand.u32 %s120, 1
        %s335 = smul.addr %s334, 4
        %s336 = scalar_lea.vmem [#allocation7], %s335
        // Predicated region
        $region41: #{tpu_custom_call.1} parent=31 // pred_check
          %p337 = pneg %p133
        $region42: #{tpu_custom_call.1} parent=31 // pred_check_branch
          %339 = sbr.rel (%p337) target = $region44
        $region43: #{tpu_custom_call.1} parent=31 // pred_region
          %341 = dma.done %s333, 64
        $region44: #{tpu_custom_call.1} parent=31 // pred_fallthru
          _
        %s342 = sand.u32 %s60, 1
        %s343 = scalar_lea.sflag [#allocation3], %s342
        %s344 = sand.u32 %s60, 1
        %s345 = smul.addr %s344, 64
        %s346 = scalar_lea.vmem [#allocation2], %s345
        %p347 = pneg %p73
        %p348 = pneg %p70
        %s349 = sand.u32 %s29, 1
        %s350 = scalar_lea.sflag [#allocation6], %s349
        %s351 = sand.u32 %s90, 1
        %s352 = smul.addr %s351, 32
        %s353 = scalar_lea.vmem [#allocation5], %s352
        %p354 = pneg %p103
        %p355 = pneg %p100
        %s356 = sand.u32 %s29, 1
        %s357 = scalar_lea.sflag [#allocation6], %s356
        %s358 = sand.u32 %s120, 1
        %s359 = smul.addr %s358, 4
        %s360 = scalar_lea.vmem [#allocation7], %s359
        %p361 = pneg %p133
        %p362 = pneg %p130
        %p363 = pneg %p159
        %p364 = pneg %p156
        %s365 = sand.u32 %s146, 1
        %s366 = scalar_lea.sflag [#allocation4], %s365
        %s367 = sand.u32 %s146, 1
        %s368 = smul.addr %s367, 16
        %s369 = scalar_lea.vmem [#allocation8], %s368
        %p370 = pneg %p185
        %p371 = pneg %p182
        %s372 = sand.u32 %s29, 1
        %s373 = scalar_lea.sflag [#allocation10], %s372
        %s374 = sand.u32 %s172, 1
        %s375 = smul.addr %s374, 16
        %s376 = scalar_lea.vmem [#allocation9], %s375
        %p377 = pneg %p211
        %p378 = pneg %p208
        %s379 = sand.u32 %s29, 1
        %s380 = scalar_lea.sflag [#allocation10], %s379
        %s381 = sand.u32 %s198, 1
        %s382 = smul.addr %s381, 16
        %s383 = scalar_lea.vmem [#allocation11], %s382
        %s384 = sadd.s32 %s34, %s35
        %s385 = smul.u32 2, %s36
        %s386 = sadd.s32 %s34, %s35
        %s387 = smul.u32 2, %s36
        %s388 = sadd.s32 %s34, %s35
        %s389 = smul.u32 2, %s36
        %p390 = scmp.eq.s32.totalorder %s35, 0
        %p391 = scmp.eq.s32.totalorder %s36, 0
        %p392 = pnand %p390, %p391
        %p393 = pneg %p392
        // Predicated region
        $region45: #{tpu_custom_call.1} parent=31 // pred_check
          _
        $region46: #{tpu_custom_call.1} parent=31 // pred_check_branch
          %395 = sbr.rel (%p392) target = $region48
        $region47: #{tpu_custom_call.1} parent=31 // pred_region
          %396 = vst [vmem:[%s369] sm:$0xff] 0.0
          %397 = vst [vmem:[%s369 + $0x8] sm:$0xff] 0.0
          %398 = vst [vmem:[%s376] sm:$0xff] 0.0
          %399 = vst [vmem:[%s376 + $0x8] sm:$0xff] 0.0
          %400 = vst [vmem:[%s383] sm:$0xff] 0.0
          %401 = vst [vmem:[%s383 + $0x8] sm:$0xff] 0.0
        $region48: #{tpu_custom_call.1} parent=31 // pred_fallthru
          _
        %v402 = vld [vmem:[%s316] sm:$0xff]
        %v403 = vld [vmem:[%s316 + $0x8] sm:$0xff]
        %s404 = scalar_lea.vmem %s316, 16 [#allocation2]
        %v405 = vld [vmem:[%s404] sm:$0xff]
        %v406 = vld [vmem:[%s404 + $0x8] sm:$0xff]
        %s407 = scalar_lea.vmem %s316, 32 [#allocation2]
        %v408 = vld [vmem:[%s407] sm:$0xff]
        %v409 = vld [vmem:[%s407 + $0x8] sm:$0xff]
        %s410 = scalar_lea.vmem %s316, 48 [#allocation2]
        %v411 = vld [vmem:[%s410] sm:$0xff]
        %v412 = vld [vmem:[%s410 + $0x8] sm:$0xff]
        %v413 = vld [vmem:[%s326] sm:$0xff]
        %v414 = vld [vmem:[%s326 + $0x8] sm:$0xff]
        %s415 = scalar_lea.vmem %s326, 16 [#allocation5]
        %v416 = vld [vmem:[%s415] sm:$0xff]
        %v417 = vld [vmem:[%s415 + $0x8] sm:$0xff]
        %v418 = vld [vmem:[%s336] sm:$0x3]
        %v419 = vld [vmem:[%s336 + $0x2] sm:$0x3]
        %v420 = vunpack.c.0.s8 %v418
        %v421 = vunpack.c.0.s8 %v419
        %v422 = vcvt.s32.f32 %v420
        %v423 = vcvt.s32.f32 %v421
        %v424 = vmul.f32 %v413, %v413
        %v425 = vmul.f32 %v414, %v414
        %v426 = vmul.f32 %v416, %v416
        %v427 = vmul.f32 %v417, %v417
        %v428 = vsub.f32 %v424, %v426
        %v429 = vsub.f32 %v425, %v427
        %v430 = vmul.f32 %v413, 2.0
        %v431 = vmul.f32 %v414, 2.0
        %v432 = vmul.f32 %v430, %v416
        %v433 = vmul.f32 %v431, %v417
        %v434 = vmul.f32 %v428, %v428
        %v435 = vmul.f32 %v429, %v429
        %v436 = vmul.f32 %v432, %v432
        %v437 = vmul.f32 %v433, %v433
        %v438 = vsub.f32 %v434, %v436
        %v439 = vsub.f32 %v435, %v437
        %v440 = vmul.f32 %v428, 2.0
        %v441 = vmul.f32 %v429, 2.0
        %v442 = vmul.f32 %v440, %v432
        %v443 = vmul.f32 %v441, %v433
        %v444 = vmul.f32 %v408, %v428
        %v445 = vmul.f32 %v409, %v429
        %v446 = vmul.f32 %v411, %v432
        %v447 = vmul.f32 %v412, %v433
        %v448 = vsub.f32 %v444, %v446
        %v449 = vsub.f32 %v445, %v447
        %v450 = vmul.f32 %v408, %v432
        %v451 = vmul.f32 %v409, %v433
        %v452 = vmul.f32 %v411, %v428
        %v453 = vmul.f32 %v412, %v429
        %v454 = vadd.f32 %v450, %v452
        %v455 = vadd.f32 %v451, %v453
        %v456 = vadd.f32 %v438, %v448
        %v457 = vadd.f32 %v439, %v449
        %v458 = vadd.f32 %v456, %v402
        %v459 = vadd.f32 %v457, %v403
        %v460 = vadd.f32 %v442, %v454
        %v461 = vadd.f32 %v443, %v455
        %v462 = vadd.f32 %v460, %v405
        %v463 = vadd.f32 %v461, %v406
        %v464 = vmul.f32 %v458, %v458
        %v465 = vmul.f32 %v459, %v459
        %v466 = vmul.f32 %v462, %v462
        %v467 = vmul.f32 %v463, %v463
        %v468 = vadd.f32 %v464, %v466
        %v469 = vadd.f32 %v465, %v467
        %v470 = vmul.f32 %v468, %v422
        %v471 = vmul.f32 %v469, %v423
        %v472 = vmul.f32 %v402, %v402
        %v473 = vmul.f32 %v403, %v403
        %v474 = vmul.f32 %v405, %v405
        %v475 = vmul.f32 %v406, %v406
        %v476 = vadd.f32 %v472, %v474
        %v477 = vadd.f32 %v473, %v475
        %v478 = vsub.f32 1.0, %v476
        %v479 = vsub.f32 1.0, %v477
        %v480 = vand.u32 2147483647, %v478
        %v481 = vand.u32 2147483647, %v479
        %v482 = vmul.f32 %v408, %v408
        %v483 = vmul.f32 %v409, %v409
        %v484 = vmul.f32 %v411, %v411
        %v485 = vmul.f32 %v412, %v412
        %v486 = vadd.f32 %v482, %v484
        %v487 = vadd.f32 %v483, %v485
        %v488 = vsub.f32 1.0, %v486
        %v489 = vsub.f32 1.0, %v487
        %v490 = vand.u32 2147483647, %v488
        %v491 = vand.u32 2147483647, %v489
        %v492 = vld [vmem:[%s369] sm:$0xff]
        %v493 = vld [vmem:[%s369 + $0x8] sm:$0xff]
        %v494 = vadd.f32 %v492, %v470
        %v495 = vadd.f32 %v493, %v471
        %496 = vst [vmem:[%s369] sm:$0xff] %v494
        %497 = vst [vmem:[%s369 + $0x8] sm:$0xff] %v495
        %v498 = vld [vmem:[%s376] sm:$0xff]
        %v499 = vld [vmem:[%s376 + $0x8] sm:$0xff]
        %v500 = vadd.f32 %v498, %v480
        %v501 = vadd.f32 %v499, %v481
        %502 = vst [vmem:[%s376] sm:$0xff] %v500
        %503 = vst [vmem:[%s376 + $0x8] sm:$0xff] %v501
        %v504 = vld [vmem:[%s383] sm:$0xff]
        %v505 = vld [vmem:[%s383 + $0x8] sm:$0xff]
        %v506 = vadd.f32 %v504, %v490
        %v507 = vadd.f32 %v505, %v491
        %508 = vst [vmem:[%s383] sm:$0xff] %v506
        %509 = vst [vmem:[%s383 + $0x8] sm:$0xff] %v507
        %s510 = sand.u32 %s146, 1
        %s511 = scalar_lea.sflag [#allocation4], %s510
        %s512 = sand.u32 %s146, 1
        %s513 = smul.addr %s512, 16
        %s514 = scalar_lea.vmem [#allocation8], %s513
        %s515 = sand.u32 %s29, 1
        %s516 = scalar_lea.sflag [#allocation10], %s515
        %s517 = sand.u32 %s172, 1
        %s518 = smul.addr %s517, 16
        %s519 = scalar_lea.vmem [#allocation9], %s518
        %s520 = sand.u32 %s29, 1
        %s521 = scalar_lea.sflag [#allocation10], %s520
        %s522 = sand.u32 %s198, 1
        %s523 = smul.addr %s522, 16
        %s524 = scalar_lea.vmem [#allocation11], %s523
        // Predicated region
        $region49: #{tpu_custom_call.1} parent=31 // pred_check
          %p525 = pneg %p156
        $region50: #{tpu_custom_call.1} parent=31 // pred_check_branch
          %527 = sbr.rel (%p525) target = $region52
        $region51: #{tpu_custom_call.1} parent=31 // pred_region
          %529 = vsyncadd %s511, 0
          %s530 = smul.addr %s34, 2
          %s531 = smul.addr %s530, 8
          %s532 = scalar_lea.hbm %s3, %s531
          %s533 = sshll.u32 %s514, 4
          %s534 = int_to_ptr.vmem [resolvable:$true] %s533
          %s535 = sshll.u32 %s532, 4
          %s536 = int_to_ptr.hbm [resolvable:$true] %s535
          %541 = dma.vmem_to_hbm [thread:$0]  %s534, 256, %s536, %s511, 128, 128, 8
        $region52: #{tpu_custom_call.1} parent=31 // pred_fallthru
          _
        // Predicated region
        $region53: #{tpu_custom_call.1} parent=31 // pred_check
          %p542 = pneg %p182
        $region54: #{tpu_custom_call.1} parent=31 // pred_check_branch
          %544 = sbr.rel (%p542) target = $region56
        $region55: #{tpu_custom_call.1} parent=31 // pred_region
          %546 = vsyncadd %s516, 0
          %s547 = smul.addr %s34, 2
          %s548 = smul.addr %s547, 8
          %s549 = scalar_lea.hbm %s4, %s548
          %s550 = sshll.u32 %s519, 4
          %s551 = int_to_ptr.vmem [resolvable:$true] %s550
          %s552 = sshll.u32 %s549, 4
          %s553 = int_to_ptr.hbm [resolvable:$true] %s552
          %558 = dma.vmem_to_hbm [thread:$0]  %s551, 256, %s553, %s516, 128, 128, 8
        $region56: #{tpu_custom_call.1} parent=31 // pred_fallthru
          _
        // Predicated region
        $region57: #{tpu_custom_call.1} parent=31 // pred_check
          %p559 = pneg %p208
        $region58: #{tpu_custom_call.1} parent=31 // pred_check_branch
          %561 = sbr.rel (%p559) target = $region60
        $region59: #{tpu_custom_call.1} parent=31 // pred_region
          %563 = vsyncadd %s521, 0
          %s564 = smul.addr %s34, 2
          %s565 = smul.addr %s564, 8
          %s566 = scalar_lea.hbm %s5, %s565
          %s567 = sshll.u32 %s524, 4
          %s568 = int_to_ptr.vmem [resolvable:$true] %s567
          %s569 = sshll.u32 %s566, 4
          %s570 = int_to_ptr.hbm [resolvable:$true] %s569
          %575 = dma.vmem_to_hbm [thread:$0]  %s568, 256, %s570, %s521, 128, 128, 8
        $region60: #{tpu_custom_call.1} parent=31 // pred_fallthru
          _
      $region32: #{tpu_custom_call.1} parent=5 // pred_fallthru
        _
      %p576 = scmp.le.s32.totalorder 2, %s24
      // Predicated region
      $region61: #{tpu_custom_call.1} parent=5 // pred_check
        %p577 = pneg %p576
      $region62: #{tpu_custom_call.1} parent=5 // pred_check_branch
        %579 = sbr.rel (%p577) target = $region64
      $region63: #{tpu_custom_call.1} parent=5 // pred_region
        %s580 = ssub.s32 %s24, 2
        // Predicated region
        $region65: #{tpu_custom_call.1} parent=63 // pred_check
          %p581 = pneg %p162
        $region66: #{tpu_custom_call.1} parent=63 // pred_check_branch
          %583 = sbr.rel (%p581) target = $region68
        $region67: #{tpu_custom_call.1} parent=63 // pred_region
          %s584 = sand.u32 %s147, 1
          %s585 = scalar_lea.sflag [#allocation4], %s584
          %s586 = sand.u32 %s147, 1
          %s587 = smul.addr %s586, 16
          %s588 = scalar_lea.vmem [#allocation8], %s587
          %590 = dma.done %s585, 256
        $region68: #{tpu_custom_call.1} parent=63 // pred_fallthru
          _
        // Predicated region
        $region69: #{tpu_custom_call.1} parent=63 // pred_check
          %p591 = pneg %p188
        $region70: #{tpu_custom_call.1} parent=63 // pred_check_branch
          %593 = sbr.rel (%p591) target = $region72
        $region71: #{tpu_custom_call.1} parent=63 // pred_region
          %s594 = sand.u32 %s30, 1
          %s595 = scalar_lea.sflag [#allocation10], %s594
          %s596 = sand.u32 %s173, 1
          %s597 = smul.addr %s596, 16
          %s598 = scalar_lea.vmem [#allocation9], %s597
          %600 = dma.done %s595, 256
        $region72: #{tpu_custom_call.1} parent=63 // pred_fallthru
          _
        // Predicated region
        $region73: #{tpu_custom_call.1} parent=63 // pred_check
          %p601 = pneg %p214
        $region74: #{tpu_custom_call.1} parent=63 // pred_check_branch
          %603 = sbr.rel (%p601) target = $region76
        $region75: #{tpu_custom_call.1} parent=63 // pred_region
          %s604 = sand.u32 %s30, 1
          %s605 = scalar_lea.sflag [#allocation10], %s604
          %s606 = sand.u32 %s199, 1
          %s607 = smul.addr %s606, 16
          %s608 = scalar_lea.vmem [#allocation11], %s607
          %610 = dma.done %s605, 256
        $region76: #{tpu_custom_call.1} parent=63 // pred_fallthru
          _
      $region64: #{tpu_custom_call.1} parent=5 // pred_fallthru
        _
    $region6: #{tpu_custom_call.1} parent=1 // loop_footer
      %s28 = sadd.s32 1, %s24
    $region7: #{tpu_custom_call.1} parent=1 // loop_footer_branch
      %23 = sbr.rel target = $region3
    $region8: #{tpu_custom_call.1} parent=1 // loop_exit
      _
    %611 = vsyncpa [#allocation3], 1
    %s612 = scalar_lea.sflag [#allocation3], 1
    %613 = vsyncpa %s612, 1
    %614 = vsyncpa [#allocation6], 1
    %s615 = scalar_lea.sflag [#allocation6], 1
    %616 = vsyncpa %s615, 1
    %617 = vsyncpa [#allocation4], 1
    %s618 = scalar_lea.sflag [#allocation4], 1
    %619 = vsyncpa %s618, 1
    %620 = vsyncpa [#allocation10], 1
    %s621 = scalar_lea.sflag [#allocation10], 1
    %622 = vsyncpa %s621, 1

</llo_original>
